<compile_context>
chip_gen: v5e
topology: v5e:2x2
jax: 0.10.0
libtpu: 0.0.40
codegen_flags: <defaults>
</compile_context>

<pallas_src>
import functools
import math

import jax
import jax.numpy as jnp
from jax import lax
from jax.experimental import pallas as pl
from jax.experimental.pallas import tpu as pltpu

# Contract the last axis of both operands: A (m,k) x B (n,k) -> A @ B.T (m,n).
_NT = (((1,), (1,)), ((), ()))
_FUSED_VMEM_BUDGET = 12 * 1024 * 1024  # conservative; leaves headroom vs scoped VMEM


def _round_up(x, m):
    return (x + m - 1) // m * m


# --------------------------- fused single-call path ---------------------------
def _fused_kernel(emb0_ref, emb1_ref, w0_ref, b0_ref, w1_ref, b1_ref,
                  adj_ref, *, alpha, nv_dtype):
    z0 = lax.dot_general(emb0_ref[...], w0_ref[...], _NT,
                         preferred_element_type=jnp.float32) + b0_ref[...]
    nv1 = jnp.tanh(alpha * z0).astype(nv_dtype)
    z1 = lax.dot_general(emb1_ref[...], w1_ref[...], _NT,
                         preferred_element_type=jnp.float32) + b1_ref[...]
    nv2 = jnp.tanh(alpha * z1).astype(nv_dtype)
    m = lax.dot_general(nv1, nv2, _NT, preferred_element_type=jnp.float32)
    mt = lax.dot_general(nv2, nv1, _NT, preferred_element_type=jnp.float32)
    adj_ref[...] = jnp.maximum(jnp.tanh(alpha * (m - mt)), 0.0)


# ------------------------------- tiled path -----------------------------------
def _nodevec_packed_kernel(emb0_ref, emb1_ref, w0_ref, b0_ref, w1_ref, b1_ref,
                           pk_i_ref, pk_j_ref, *, alpha, d_pad):
    # nodevec = tanh(alpha * (emb @ W.T + b)); NT contraction, no in-kernel .T.
    z0 = lax.dot_general(emb0_ref[...], w0_ref[...], _NT,
                         preferred_element_type=jnp.float32) + b0_ref[...]
    nv1 = jnp.tanh(alpha * z0)
    z1 = lax.dot_general(emb1_ref[...], w1_ref[...], _NT,
                         preferred_element_type=jnp.float32) + b1_ref[...]
    nv2 = jnp.tanh(alpha * z1)
    # Packed so phase 2 needs a single contraction over 2*d_pad:
    #   pk_i @ pk_j.T = nv1@nv2.T - nv2@nv1.T
    pk_i_ref[:, :d_pad] = nv1.astype(pk_i_ref.dtype)
    pk_i_ref[:, d_pad:] = nv2.astype(pk_i_ref.dtype)
    pk_j_ref[:, :d_pad] = nv2.astype(pk_j_ref.dtype)
    pk_j_ref[:, d_pad:] = (-nv1).astype(pk_j_ref.dtype)


def _adj_packed_kernel(pk_i_ref, pk_j_ref, adj_ref, *, alpha):
    m = lax.dot_general(pk_i_ref[...], pk_j_ref[...], _NT,
                        preferred_element_type=jnp.float32)
    adj_ref[...] = jnp.maximum(jnp.tanh(alpha * m), 0.0)


# -------------------------------- wrapper --------------------------------------
def mtgraph_forward(emb0, emb1, w0, b0, w1, b1, alpha, k=None,
                    tile_n=128, nv_dtype=jnp.bfloat16, force_tiled=False):
    n, d = emb0.shape
    n_pad = _round_up(n, tile_n)
    d_pad = _round_up(d, 128)
    alpha = float(alpha)

    def pad2(a, rows, cols):
        a = a.astype(jnp.float32)
        return jnp.pad(a, ((0, rows - a.shape[0]), (0, cols - a.shape[1])))

    emb0_p = pad2(emb0, n_pad, d_pad)
    emb1_p = pad2(emb1, n_pad, d_pad)
    w0_p = pad2(w0, d_pad, d_pad)
    w1_p = pad2(w1, d_pad, d_pad)
    b0_p = pad2(jnp.reshape(b0, (1, -1)), 1, d_pad)
    b1_p = pad2(jnp.reshape(b1, (1, -1)), 1, d_pad)

    # Rough VMEM footprint of the fully fused kernel (x2 for buffering headroom).
    fused_bytes = 2 * (2 * n_pad * d_pad * 4      # emb0, emb1
                       + 2 * d_pad * d_pad * 4    # w0, w1
                       + 2 * d_pad * 4            # biases
                       + n_pad * n_pad * 4)       # adjacency output

    if (not force_tiled) and fused_bytes <= _FUSED_VMEM_BUDGET:
        # ---- Fused path: everything in one kernel, one launch, no nv HBM trip.
        adj = pl.pallas_call(
            functools.partial(_fused_kernel, alpha=alpha, nv_dtype=nv_dtype),
            out_shape=jax.ShapeDtypeStruct((n_pad, n_pad), jnp.float32),
            grid=(1,),
            in_specs=[pl.BlockSpec((n_pad, d_pad), lambda i: (0, 0)),
                      pl.BlockSpec((n_pad, d_pad), lambda i: (0, 0)),
                      pl.BlockSpec((d_pad, d_pad), lambda i: (0, 0)),
                      pl.BlockSpec((1, d_pad), lambda i: (0, 0)),
                      pl.BlockSpec((d_pad, d_pad), lambda i: (0, 0)),
                      pl.BlockSpec((1, d_pad), lambda i: (0, 0))],
            out_specs=pl.BlockSpec((n_pad, n_pad), lambda i: (0, 0)),
            compiler_params=pltpu.CompilerParams(
                dimension_semantics=("arbitrary",)),
        )(emb0_p, emb1_p, w0_p, b0_p, w1_p, b1_p)
    else:
        n_tiles = n_pad // tile_n

        # ---- Phase 1: packed node vectors, computed once, row-tiled, bf16. ----
        pk_spec = pl.BlockSpec((tile_n, 2 * d_pad), lambda i: (i, 0))
        emb_spec = pl.BlockSpec((tile_n, d_pad), lambda i: (i, 0))
        full_w = pl.BlockSpec((d_pad, d_pad), lambda i: (0, 0))
        full_b = pl.BlockSpec((1, d_pad), lambda i: (0, 0))
        pk_i, pk_j = pl.pallas_call(
            functools.partial(_nodevec_packed_kernel, alpha=alpha, d_pad=d_pad),
            out_shape=(jax.ShapeDtypeStruct((n_pad, 2 * d_pad), nv_dtype),
                       jax.ShapeDtypeStruct((n_pad, 2 * d_pad), nv_dtype)),
            grid=(n_tiles,),
            in_specs=[emb_spec, emb_spec, full_w, full_b, full_w, full_b],
            out_specs=(pk_spec, pk_spec),
            compiler_params=pltpu.CompilerParams(
                dimension_semantics=("parallel",)),
        )(emb0_p, emb1_p, w0_p, b0_p, w1_p, b1_p)

        # ---- Phase 2: adjacency on an (i, j) output-tile grid, one dot/tile. --
        row_i = pl.BlockSpec((tile_n, 2 * d_pad), lambda i, j: (i, 0))
        row_j = pl.BlockSpec((tile_n, 2 * d_pad), lambda i, j: (j, 0))
        adj = pl.pallas_call(
            functools.partial(_adj_packed_kernel, alpha=alpha),
            out_shape=jax.ShapeDtypeStruct((n_pad, n_pad), jnp.float32),
            grid=(n_tiles, n_tiles),
            in_specs=[row_i, row_j],
            out_specs=pl.BlockSpec((tile_n, tile_n), lambda i, j: (i, j)),
            compiler_params=pltpu.CompilerParams(
                dimension_semantics=("parallel", "parallel")),
        )(pk_i, pk_j)

    adj = adj[:n, :n]

    if k is not None:
        # Top-k sparsification glue (mirrors mask.scatter_(1, topk_idx, 1); adj*mask).
        _, idx = lax.top_k(adj, k)                         # (N, k)
        rows = jnp.arange(n)[:, None]
        mask = jnp.zeros_like(adj).at[rows, idx].set(1.0)
        adj = adj * mask
    return adj


def mtgraph_reference(emb0, emb1, w0, b0, w1, b1, alpha, k=None,
                      nv_dtype=jnp.bfloat16):
    """Pure-JAX reference mirroring the kernel's dtype choices."""
    hi = lax.Precision.HIGHEST
    b0 = jnp.reshape(b0, (1, -1))
    b1 = jnp.reshape(b1, (1, -1))
    nv1 = jnp.tanh(alpha * (jnp.dot(emb0, w0.T, precision=hi) + b0)).astype(nv_dtype)
    nv2 = jnp.tanh(alpha * (jnp.dot(emb1, w1.T, precision=hi) + b1)).astype(nv_dtype)
    m = jnp.dot(nv1, nv2.T, precision=hi, preferred_element_type=jnp.float32)
    mt = jnp.dot(nv2, nv1.T, precision=hi, preferred_element_type=jnp.float32)
    adj = jnp.maximum(jnp.tanh(alpha * (m - mt)), 0.0)
    if k is not None:
        n = adj.shape[0]
        _, idx = lax.top_k(adj, k)
        mask = jnp.zeros_like(adj).at[jnp.arange(n)[:, None], idx].set(1.0)
        adj = adj * mask
    return adj


def _init_params(key, num_nodes, num_units):
    k0, k1, k2, k3, k4, k5 = jax.random.split(key, 6)
    # nn.init.normal_ on embeddings
    emb0 = jax.random.normal(k0, (num_nodes, num_units), jnp.float32)
    emb1 = jax.random.normal(k1, (num_nodes, num_units), jnp.float32)
    # kaiming_uniform_(a=sqrt(5)) / default Linear bias -> U(-1/sqrt(fan_in), 1/sqrt(fan_in))
    bound = 1.0 / math.sqrt(num_units)
    w0 = jax.random.uniform(k2, (num_units, num_units), jnp.float32, -bound, bound)
    w1 = jax.random.uniform(k3, (num_units, num_units), jnp.float32, -bound, bound)
    b0 = jax.random.uniform(k4, (1, num_units), jnp.float32, -bound, bound)
    b1 = jax.random.uniform(k5, (1, num_units), jnp.float32, -bound, bound)
    return emb0, emb1, w0, b0, w1, b1


if __name__ == "__main__":
    num_nodes, num_units, alpha = 16, 32, 3.0
    params = _init_params(jax.random.PRNGKey(0), num_nodes, num_units)

    ref = jax.block_until_ready(mtgraph_reference(*params, alpha=alpha, k=None))

    # Fused fast path (small graphs).
    adj_fused = jax.block_until_ready(mtgraph_forward(*params, alpha=alpha, k=None))
    assert adj_fused.shape == (num_nodes, num_nodes)
    assert bool(jnp.all(jnp.isfinite(adj_fused)))
    assert float(jnp.max(jnp.abs(adj_fused - ref))) < 5e-2, "fused kernel/reference mismatch"

    # Tiled two-phase path (exercised explicitly so both code paths are validated).
    adj_tiled = jax.block_until_ready(
        mtgraph_forward(*params, alpha=alpha, k=None, force_tiled=True))
    assert adj_tiled.shape == (num_nodes, num_nodes)
    assert bool(jnp.all(jnp.isfinite(adj_tiled)))
    assert float(jnp.max(jnp.abs(adj_tiled - ref))) < 5e-2, "tiled kernel/reference mismatch"

    # Exercise the optional top-k path once (tie-breaking vs torch.topk may differ).
    adj_k = jax.block_until_ready(mtgraph_forward(*params, alpha=alpha, k=4))
    assert adj_k.shape == (num_nodes, num_nodes)
    assert bool(jnp.all(jnp.isfinite(adj_k)))

    print("KERNEL_OK")
</pallas_src>

<mosaic_0001>
module attributes {stable_mosaic.version = 11 : i64} {
  func.func @_fused_kernel(%arg0: i32, %arg1: memref<128x128xf32, #tpu.memory_space<vmem>>, %arg2: memref<128x128xf32, #tpu.memory_space<vmem>>, %arg3: memref<128x128xf32, #tpu.memory_space<vmem>>, %arg4: memref<1x128xf32, #tpu.memory_space<vmem>>, %arg5: memref<128x128xf32, #tpu.memory_space<vmem>>, %arg6: memref<1x128xf32, #tpu.memory_space<vmem>>, %arg7: memref<128x128xf32, #tpu.memory_space<vmem>>) attributes {dimension_semantics = [#tpu.dimension_semantics<arbitrary>], iteration_bounds = array<i64: 1>, scalar_prefetch = 0 : i64, scratch_operands = 0 : i64, tpu.core_type = #tpu.core_type<tc>, window_params = [{pipeline_mode = #tpu.pipeline_mode<synchronous>, transform_indices = @transform_0, window_bounds = array<i64: 128, 128>}, {pipeline_mode = #tpu.pipeline_mode<synchronous>, transform_indices = @transform_1, window_bounds = array<i64: 128, 128>}, {pipeline_mode = #tpu.pipeline_mode<synchronous>, transform_indices = @transform_2, window_bounds = array<i64: 128, 128>}, {pipeline_mode = #tpu.pipeline_mode<synchronous>, transform_indices = @transform_3, window_bounds = array<i64: 1, 128>}, {pipeline_mode = #tpu.pipeline_mode<synchronous>, transform_indices = @transform_4, window_bounds = array<i64: 128, 128>}, {pipeline_mode = #tpu.pipeline_mode<synchronous>, transform_indices = @transform_5, window_bounds = array<i64: 1, 128>}, {pipeline_mode = #tpu.pipeline_mode<synchronous>, transform_indices = @transform_6, window_bounds = array<i64: 128, 128>}]} {
    %c0 = arith.constant 0 : index
    %c0_0 = arith.constant 0 : index
    %0 = vector.load %arg1[%c0, %c0_0] : memref<128x128xf32, #tpu.memory_space<vmem>>, vector<128x128xf32>
    %c0_1 = arith.constant 0 : index
    %c0_2 = arith.constant 0 : index
    %1 = vector.load %arg3[%c0_1, %c0_2] : memref<128x128xf32, #tpu.memory_space<vmem>>, vector<128x128xf32>
    %cst = arith.constant dense<0.000000e+00> : vector<128x128xf32>
    %2 = tpu.matmul %0, %1, %cst {dimension_numbers = #tpu.dot_dimension_numbers<[1], [1], [0], [0], [0, 0, 1, 0], [], []>} : vector<128x128xf32>, vector<128x128xf32>, vector<128x128xf32> -> vector<128x128xf32>
    %c0_3 = arith.constant 0 : index
    %c0_4 = arith.constant 0 : index
    %3 = vector.load %arg4[%c0_3, %c0_4] : memref<1x128xf32, #tpu.memory_space<vmem>>, vector<1x128xf32>
    %4 = vector.broadcast %3 : vector<1x128xf32> to vector<128x128xf32>
    %5 = arith.addf %2, %4 : vector<128x128xf32>
    %cst_5 = arith.constant 3.000000e+00 : f32
    %6 = vector.broadcast %cst_5 : f32 to vector<128x128xf32>
    %7 = arith.mulf %6, %5 : vector<128x128xf32>
    %8 = math.tanh %7 : vector<128x128xf32>
    %9 = arith.truncf %8 : vector<128x128xf32> to vector<128x128xbf16>
    %c0_6 = arith.constant 0 : index
    %c0_7 = arith.constant 0 : index
    %10 = vector.load %arg2[%c0_6, %c0_7] : memref<128x128xf32, #tpu.memory_space<vmem>>, vector<128x128xf32>
    %c0_8 = arith.constant 0 : index
    %c0_9 = arith.constant 0 : index
    %11 = vector.load %arg5[%c0_8, %c0_9] : memref<128x128xf32, #tpu.memory_space<vmem>>, vector<128x128xf32>
    %cst_10 = arith.constant dense<0.000000e+00> : vector<128x128xf32>
    %12 = tpu.matmul %10, %11, %cst_10 {dimension_numbers = #tpu.dot_dimension_numbers<[1], [1], [0], [0], [0, 0, 1, 0], [], []>} : vector<128x128xf32>, vector<128x128xf32>, vector<128x128xf32> -> vector<128x128xf32>
    %c0_11 = arith.constant 0 : index
    %c0_12 = arith.constant 0 : index
    %13 = vector.load %arg6[%c0_11, %c0_12] : memref<1x128xf32, #tpu.memory_space<vmem>>, vector<1x128xf32>
    %14 = vector.broadcast %13 : vector<1x128xf32> to vector<128x128xf32>
    %15 = arith.addf %12, %14 : vector<128x128xf32>
    %cst_13 = arith.constant 3.000000e+00 : f32
    %16 = vector.broadcast %cst_13 : f32 to vector<128x128xf32>
    %17 = arith.mulf %16, %15 : vector<128x128xf32>
    %18 = math.tanh %17 : vector<128x128xf32>
    %19 = arith.truncf %18 : vector<128x128xf32> to vector<128x128xbf16>
    %cst_14 = arith.constant dense<0.000000e+00> : vector<128x128xf32>
    %20 = tpu.matmul %9, %19, %cst_14 {dimension_numbers = #tpu.dot_dimension_numbers<[1], [1], [0], [0], [0, 0, 1, 0], [], []>} : vector<128x128xbf16>, vector<128x128xbf16>, vector<128x128xf32> -> vector<128x128xf32>
    %cst_15 = arith.constant dense<0.000000e+00> : vector<128x128xf32>
    %21 = tpu.matmul %19, %9, %cst_15 {dimension_numbers = #tpu.dot_dimension_numbers<[1], [1], [0], [0], [0, 0, 1, 0], [], []>} : vector<128x128xbf16>, vector<128x128xbf16>, vector<128x128xf32> -> vector<128x128xf32>
    %22 = arith.subf %20, %21 : vector<128x128xf32>
    %cst_16 = arith.constant 3.000000e+00 : f32
    %23 = vector.broadcast %cst_16 : f32 to vector<128x128xf32>
    %24 = arith.mulf %23, %22 : vector<128x128xf32>
    %25 = math.tanh %24 : vector<128x128xf32>
    %cst_17 = arith.constant 0.000000e+00 : f32
    %26 = vector.broadcast %cst_17 : f32 to vector<128x128xf32>
    %27 = arith.maximumf %25, %26 : vector<128x128xf32>
    %c0_18 = arith.constant 0 : index
    %c0_19 = arith.constant 0 : index
    %28 = vector.load %arg7[%c0_18, %c0_19] : memref<128x128xf32, #tpu.memory_space<vmem>>, vector<128x128xf32>
    tpu.vector_store %arg7[%c0_18, %c0_19], %27 {strides = array<i32>} : memref<128x128xf32, #tpu.memory_space<vmem>>, vector<128x128xf32>,
    return
  }
  func.func @transform_0(%arg0: i32) -> (i32, i32) {
    %c0_i32 = arith.constant 0 : i32
    %c0_i32_0 = arith.constant 0 : i32
    %c0_i32_1 = arith.constant 0 : i32
    return %c0_i32, %c0_i32_0 : i32, i32
  }
  func.func @transform_1(%arg0: i32) -> (i32, i32) {
    %c0_i32 = arith.constant 0 : i32
    %c0_i32_0 = arith.constant 0 : i32
    %c0_i32_1 = arith.constant 0 : i32
    return %c0_i32, %c0_i32_0 : i32, i32
  }
  func.func @transform_2(%arg0: i32) -> (i32, i32) {
    %c0_i32 = arith.constant 0 : i32
    %c0_i32_0 = arith.constant 0 : i32
    %c0_i32_1 = arith.constant 0 : i32
    return %c0_i32, %c0_i32_0 : i32, i32
  }
  func.func @transform_3(%arg0: i32) -> (i32, i32) {
    %c0_i32 = arith.constant 0 : i32
    %c0_i32_0 = arith.constant 0 : i32
    %c0_i32_1 = arith.constant 0 : i32
    return %c0_i32, %c0_i32_0 : i32, i32
  }
  func.func @transform_4(%arg0: i32) -> (i32, i32) {
    %c0_i32 = arith.constant 0 : i32
    %c0_i32_0 = arith.constant 0 : i32
    %c0_i32_1 = arith.constant 0 : i32
    return %c0_i32, %c0_i32_0 : i32, i32
  }
  func.func @transform_5(%arg0: i32) -> (i32, i32) {
    %c0_i32 = arith.constant 0 : i32
    %c0_i32_0 = arith.constant 0 : i32
    %c0_i32_1 = arith.constant 0 : i32
    return %c0_i32, %c0_i32_0 : i32, i32
  }
  func.func @transform_6(%arg0: i32) -> (i32, i32) {
    %c0_i32 = arith.constant 0 : i32
    %c0_i32_0 = arith.constant 0 : i32
    %c0_i32_1 = arith.constant 0 : i32
    return %c0_i32, %c0_i32_0 : i32, i32
  }
}

</mosaic_0001>

<llo_original>
// kernel: tpu_custom_call.1
$region0: #{tpu_custom_call.1}
  #allocation0 [shape = 'u32[]', space=smem, size = 0x4, offset = 0x4, fixed_abs, tag = 'smem constant byte address 0x4 - core index']
  #allocation1 [shape = 'u32[72,128]{1,0:T(1,128)}', space=vmem, size = 0x9000, scoped, tag = 'internal scratch']
  %s0 = inlined_call_operand.hbm [shape: f32[128,128], index: 0, kind: input, shape index: {}]
  %s1 = inlined_call_operand.hbm [shape: f32[128,128], index: 1, kind: input, shape index: {}]
  %s2 = inlined_call_operand.hbm [shape: f32[128,128], index: 2, kind: input, shape index: {}]
  %s3 = inlined_call_operand.vmem [shape: f32[1,128], index: 3, kind: input, shape index: {}]
  %s4 = inlined_call_operand.hbm [shape: f32[128,128], index: 4, kind: input, shape index: {}]
  %s5 = inlined_call_operand.vmem [shape: f32[1,128], index: 5, kind: input, shape index: {}]
  %s6 = inlined_call_operand.hbm [shape: f32[128,128], index: 6, kind: output, shape index: {}]
  %s7 = sld [smem:[#allocation0]]
  $region50: #{tpu_custom_call.1} parent=0
    _
  %s9 = ssub.s32 1, %s7
  %s10 = scalar_select 0, %s9, %s7
  $region1: #{tpu_custom_call.1} parent=0
    #allocation2 [shape = 'u8[65536]{0}', space=vmem, size = 0x10000, scoped, tag = 'input window, operand 0, single buffered']
    #allocation3 [shape = 's32[1]{0}', space=sflag, size = 0x4, scoped, tag = 'scoped memory for tpu_custom_call.1']
    #allocation4 [shape = 's32[1]{0}', space=sflag, size = 0x4, scoped, tag = 'scoped memory for tpu_custom_call.1']
    #allocation5 [shape = 'u8[65536]{0}', space=vmem, size = 0x10000, scoped, tag = 'input window, operand 1, single buffered']
    #allocation6 [shape = 's32[1]{0}', space=sflag, size = 0x4, scoped, tag = 'scoped memory for tpu_custom_call.1']
    #allocation7 [shape = 'u8[65536]{0}', space=vmem, size = 0x10000, scoped, tag = 'input window, operand 2, single buffered']
    #allocation8 [shape = 'u8[65536]{0}', space=vmem, size = 0x10000, scoped, tag = 'input window, operand 4, single buffered']
    #allocation9 [shape = 's32[1]{0}', space=sflag, size = 0x4, scoped, tag = 'scoped memory for tpu_custom_call.1']
    #allocation10 [shape = 'u8[65536]{0}', space=vmem, size = 0x10000, scoped, tag = 'output window, operand 0, single buffered']
    %11 = vsyncpa [#allocation3], 0
    %12 = vsyncpa [#allocation6], 0
    %13 = vsyncpa [#allocation9], 0
    %14 = vsyncpa [#allocation4], 0
    // Predicated region
    $region2: #{tpu_custom_call.1} parent=1 // pred_check
      _
    $region3: #{tpu_custom_call.1} parent=1 // pred_check_branch
      %16 = sbr.rel (0) target = $region5
    $region4: #{tpu_custom_call.1} parent=1 // pred_region
      %18 = vsyncadd [#allocation3], 0
      %s19 = sshll.u32 %s0, 4
      %s20 = int_to_ptr.hbm [resolvable:$true] %s19
      %s21 = sshll.u32 [#allocation2], 4
      %s22 = int_to_ptr.vmem [resolvable:$true] %s21
      %27 = dma.hbm_to_vmem [thread:$0]  %s20, 2048, %s22, [#allocation3], 128, 128, 8
    $region5: #{tpu_custom_call.1} parent=1 // pred_fallthru
      _
    // Predicated region
    $region6: #{tpu_custom_call.1} parent=1 // pred_check
      _
    $region7: #{tpu_custom_call.1} parent=1 // pred_check_branch
      %29 = sbr.rel (0) target = $region9
    $region8: #{tpu_custom_call.1} parent=1 // pred_region
      %31 = vsyncadd [#allocation6], 0
      %s32 = sshll.u32 %s1, 4
      %s33 = int_to_ptr.hbm [resolvable:$true] %s32
      %s34 = sshll.u32 [#allocation5], 4
      %s35 = int_to_ptr.vmem [resolvable:$true] %s34
      %40 = dma.hbm_to_vmem [thread:$0]  %s33, 2048, %s35, [#allocation6], 128, 128, 8
    $region9: #{tpu_custom_call.1} parent=1 // pred_fallthru
      _
    // Predicated region
    $region10: #{tpu_custom_call.1} parent=1 // pred_check
      _
    $region11: #{tpu_custom_call.1} parent=1 // pred_check_branch
      %42 = sbr.rel (0) target = $region13
    $region12: #{tpu_custom_call.1} parent=1 // pred_region
      %44 = vsyncadd [#allocation6], 0
      %s45 = sshll.u32 %s2, 4
      %s46 = int_to_ptr.hbm [resolvable:$true] %s45
      %s47 = sshll.u32 [#allocation7], 4
      %s48 = int_to_ptr.vmem [resolvable:$true] %s47
      %53 = dma.hbm_to_vmem [thread:$0]  %s46, 2048, %s48, [#allocation6], 128, 128, 8
    $region13: #{tpu_custom_call.1} parent=1 // pred_fallthru
      _
    // Predicated region
    $region14: #{tpu_custom_call.1} parent=1 // pred_check
      _
    $region15: #{tpu_custom_call.1} parent=1 // pred_check_branch
      %55 = sbr.rel (0) target = $region17
    $region16: #{tpu_custom_call.1} parent=1 // pred_region
      _
    $region17: #{tpu_custom_call.1} parent=1 // pred_fallthru
      _
    // Predicated region
    $region18: #{tpu_custom_call.1} parent=1 // pred_check
      _
    $region19: #{tpu_custom_call.1} parent=1 // pred_check_branch
      %57 = sbr.rel (0) target = $region21
    $region20: #{tpu_custom_call.1} parent=1 // pred_region
      %59 = vsyncadd [#allocation9], 0
      %s60 = sshll.u32 %s4, 4
      %s61 = int_to_ptr.hbm [resolvable:$true] %s60
      %s62 = sshll.u32 [#allocation8], 4
      %s63 = int_to_ptr.vmem [resolvable:$true] %s62
      %68 = dma.hbm_to_vmem [thread:$0]  %s61, 2048, %s63, [#allocation9], 128, 128, 8
    $region21: #{tpu_custom_call.1} parent=1 // pred_fallthru
      _
    // Predicated region
    $region22: #{tpu_custom_call.1} parent=1 // pred_check
      _
    $region23: #{tpu_custom_call.1} parent=1 // pred_check_branch
      %70 = sbr.rel (0) target = $region25
    $region24: #{tpu_custom_call.1} parent=1 // pred_region
      _
    $region25: #{tpu_custom_call.1} parent=1 // pred_fallthru
      _
    // Predicated region
    $region26: #{tpu_custom_call.1} parent=1 // pred_check
      _
    $region27: #{tpu_custom_call.1} parent=1 // pred_check_branch
      %72 = sbr.rel (0) target = $region29
    $region28: #{tpu_custom_call.1} parent=1 // pred_region
      %74 = dma.done [#allocation3], 2048
    $region29: #{tpu_custom_call.1} parent=1 // pred_fallthru
      _
    // Predicated region
    $region30: #{tpu_custom_call.1} parent=1 // pred_check
      _
    $region31: #{tpu_custom_call.1} parent=1 // pred_check_branch
      %76 = sbr.rel (0) target = $region33
    $region32: #{tpu_custom_call.1} parent=1 // pred_region
      %78 = dma.done [#allocation6], 2048
    $region33: #{tpu_custom_call.1} parent=1 // pred_fallthru
      _
    // Predicated region
    $region34: #{tpu_custom_call.1} parent=1 // pred_check
      _
    $region35: #{tpu_custom_call.1} parent=1 // pred_check_branch
      %80 = sbr.rel (0) target = $region37
    $region36: #{tpu_custom_call.1} parent=1 // pred_region
      %82 = dma.done [#allocation6], 2048
    $region37: #{tpu_custom_call.1} parent=1 // pred_fallthru
      _
    // Predicated region
    $region38: #{tpu_custom_call.1} parent=1 // pred_check
      _
    $region39: #{tpu_custom_call.1} parent=1 // pred_check_branch
      %84 = sbr.rel (0) target = $region41
    $region40: #{tpu_custom_call.1} parent=1 // pred_region
      %86 = dma.done [#allocation9], 2048
    $region41: #{tpu_custom_call.1} parent=1 // pred_fallthru
      _
    %v87 = vld [vmem:[#allocation2] sm:$0xff]
    %v88 = vld [vmem:[#allocation2 + $0x8] sm:$0xff]
    %v89 = vld [vmem:[#allocation2 + $0x10] sm:$0xff]
    %v90 = vld [vmem:[#allocation2 + $0x18] sm:$0xff]
    %v91 = vld [vmem:[#allocation2 + $0x20] sm:$0xff]
    %v92 = vld [vmem:[#allocation2 + $0x28] sm:$0xff]
    %v93 = vld [vmem:[#allocation2 + $0x30] sm:$0xff]
    %v94 = vld [vmem:[#allocation2 + $0x38] sm:$0xff]
    %v95 = vld [vmem:[#allocation2 + $0x40] sm:$0xff]
    %v96 = vld [vmem:[#allocation2 + $0x48] sm:$0xff]
    %v97 = vld [vmem:[#allocation2 + $0x50] sm:$0xff]
    %v98 = vld [vmem:[#allocation2 + $0x58] sm:$0xff]
    %v99 = vld [vmem:[#allocation2 + $0x60] sm:$0xff]
    %v100 = vld [vmem:[#allocation2 + $0x68] sm:$0xff]
    %v101 = vld [vmem:[#allocation2 + $0x70] sm:$0xff]
    %v102 = vld [vmem:[#allocation2 + $0x78] sm:$0xff]
    %v103 = vld [vmem:[#allocation7] sm:$0xff]
    %v104 = vld [vmem:[#allocation7 + $0x8] sm:$0xff]
    %v105 = vld [vmem:[#allocation7 + $0x10] sm:$0xff]
    %v106 = vld [vmem:[#allocation7 + $0x18] sm:$0xff]
    %v107 = vld [vmem:[#allocation7 + $0x20] sm:$0xff]
    %v108 = vld [vmem:[#allocation7 + $0x28] sm:$0xff]
    %v109 = vld [vmem:[#allocation7 + $0x30] sm:$0xff]
    %v110 = vld [vmem:[#allocation7 + $0x38] sm:$0xff]
    %v111 = vld [vmem:[#allocation7 + $0x40] sm:$0xff]
    %v112 = vld [vmem:[#allocation7 + $0x48] sm:$0xff]
    %v113 = vld [vmem:[#allocation7 + $0x50] sm:$0xff]
    %v114 = vld [vmem:[#allocation7 + $0x58] sm:$0xff]
    %v115 = vld [vmem:[#allocation7 + $0x60] sm:$0xff]
    %v116 = vld [vmem:[#allocation7 + $0x68] sm:$0xff]
    %v117 = vld [vmem:[#allocation7 + $0x70] sm:$0xff]
    %v118 = vld [vmem:[#allocation7 + $0x78] sm:$0xff]
    %v119 = vld [vmem:[%s3] sm:$0x1]
    %v121 = vperm.slane %v119, 0
    %123 = vmatpush.xpose.msra.mxu0 %v118
    %124 = vmatpush.xpose.msra.mxu0 %v117
    %125 = vmatpush.xpose.msra.mxu0 %v116
    %126 = vmatpush.xpose.msra.mxu0 %v115
    %127 = vmatpush.xpose.msra.mxu0 %v114
    %128 = vmatpush.xpose.msra.mxu0 %v113
    %129 = vmatpush.xpose.msra.mxu0 %v112
    %130 = vmatpush.xpose.msra.mxu0 %v111
    %131 = vmatpush.xpose.msra.mxu0 %v110
    %132 = vmatpush.xpose.msra.mxu0 %v109
    %133 = vmatpush.xpose.msra.mxu0 %v108
    %134 = vmatpush.xpose.msra.mxu0 %v107
    %135 = vmatpush.xpose.msra.mxu0 %v106
    %136 = vmatpush.xpose.msra.mxu0 %v105
    %137 = vmatpush.xpose.msra.mxu0 %v104
    %138 = vmatpush.xpose.msra.mxu0 %v103
    %139 = vmatmul.f32.gmra.mxu0 %v87
    %v140 = vpop.f32.mrf.mxu0
    %v141 = vadd.f32 %v121, %v140
    %142 = vmatmul.f32.gmra.mxu0 %v88
    %v143 = vpop.f32.mrf.mxu0
    %v144 = vadd.f32 %v121, %v143
    %145 = vmatmul.f32.gmra.mxu0 %v89
    %v146 = vpop.f32.mrf.mxu0
    %v147 = vadd.f32 %v121, %v146
    %148 = vmatmul.f32.gmra.mxu0 %v90
    %v149 = vpop.f32.mrf.mxu0
    %v150 = vadd.f32 %v121, %v149
    %151 = vmatmul.f32.gmra.mxu0 %v91
    %v152 = vpop.f32.mrf.mxu0
    %v153 = vadd.f32 %v121, %v152
    %154 = vmatmul.f32.gmra.mxu0 %v92
    %v155 = vpop.f32.mrf.mxu0
    %v156 = vadd.f32 %v121, %v155
    %157 = vmatmul.f32.gmra.mxu0 %v93
    %v158 = vpop.f32.mrf.mxu0
    %v159 = vadd.f32 %v121, %v158
    %160 = vmatmul.f32.gmra.mxu0 %v94
    %v161 = vpop.f32.mrf.mxu0
    %v162 = vadd.f32 %v121, %v161
    %163 = vmatmul.f32.gmra.mxu0 %v95
    %v164 = vpop.f32.mrf.mxu0
    %v165 = vadd.f32 %v121, %v164
    %166 = vmatmul.f32.gmra.mxu0 %v96
    %v167 = vpop.f32.mrf.mxu0
    %v168 = vadd.f32 %v121, %v167
    %169 = vmatmul.f32.gmra.mxu0 %v97
    %v170 = vpop.f32.mrf.mxu0
    %v171 = vadd.f32 %v121, %v170
    %172 = vmatmul.f32.gmra.mxu0 %v98
    %v173 = vpop.f32.mrf.mxu0
    %v174 = vadd.f32 %v121, %v173
    %175 = vmatmul.f32.gmra.mxu0 %v99
    %v176 = vpop.f32.mrf.mxu0
    %v177 = vadd.f32 %v121, %v176
    %178 = vmatmul.f32.gmra.mxu0 %v100
    %v179 = vpop.f32.mrf.mxu0
    %v180 = vadd.f32 %v121, %v179
    %181 = vmatmul.f32.gmra.mxu0 %v101
    %v182 = vpop.f32.mrf.mxu0
    %v183 = vadd.f32 %v121, %v182
    %184 = vmatmul.f32.gmra.mxu0 %v102
    %v185 = vpop.f32.mrf.mxu0
    %v186 = vadd.f32 %v121, %v185
    %187 = vdwg.mxu0
    %v188 = vmul.f32 %v141, 3.0
    %v189 = vmul.f32 %v144, 3.0
    %v190 = vmul.f32 %v147, 3.0
    %v191 = vmul.f32 %v150, 3.0
    %v192 = vmul.f32 %v153, 3.0
    %v193 = vmul.f32 %v156, 3.0
    %v194 = vmul.f32 %v159, 3.0
    %v195 = vmul.f32 %v162, 3.0
    %v196 = vmul.f32 %v165, 3.0
    %v197 = vmul.f32 %v168, 3.0
    %v198 = vmul.f32 %v171, 3.0
    %v199 = vmul.f32 %v174, 3.0
    %v200 = vmul.f32 %v177, 3.0
    %v201 = vmul.f32 %v180, 3.0
    %v202 = vmul.f32 %v183, 3.0
    %v203 = vmul.f32 %v186, 3.0
    %v204 = vtanh.pop %v188
    %v205 = vtanh.pop %v189
    %v206 = vtanh.pop %v190
    %v207 = vtanh.pop %v191
    %v208 = vtanh.pop %v192
    %v209 = vtanh.pop %v193
    %v210 = vtanh.pop %v194
    %v211 = vtanh.pop %v195
    %v212 = vtanh.pop %v196
    %v213 = vtanh.pop %v197
    %v214 = vtanh.pop %v198
    %v215 = vtanh.pop %v199
    %v216 = vtanh.pop %v200
    %v217 = vtanh.pop %v201
    %v218 = vtanh.pop %v202
    %v219 = vtanh.pop %v203
    %v220 = vpack.c.bf16 %v205, %v204
    %v221 = vpack.c.bf16 %v207, %v206
    %v222 = vpack.c.bf16 %v209, %v208
    %v223 = vpack.c.bf16 %v211, %v210
    %v224 = vpack.c.bf16 %v213, %v212
    %v225 = vpack.c.bf16 %v215, %v214
    %v226 = vpack.c.bf16 %v217, %v216
    %v227 = vpack.c.bf16 %v219, %v218
    %v228 = vld [vmem:[#allocation5] sm:$0xff]
    %v229 = vld [vmem:[#allocation5 + $0x8] sm:$0xff]
    %v230 = vld [vmem:[#allocation5 + $0x10] sm:$0xff]
    %v231 = vld [vmem:[#allocation5 + $0x18] sm:$0xff]
    %v232 = vld [vmem:[#allocation5 + $0x20] sm:$0xff]
    %v233 = vld [vmem:[#allocation5 + $0x28] sm:$0xff]
    %v234 = vld [vmem:[#allocation5 + $0x30] sm:$0xff]
    %v235 = vld [vmem:[#allocation5 + $0x38] sm:$0xff]
    %v236 = vld [vmem:[#allocation5 + $0x40] sm:$0xff]
    %v237 = vld [vmem:[#allocation5 + $0x48] sm:$0xff]
    %v238 = vld [vmem:[#allocation5 + $0x50] sm:$0xff]
    %v239 = vld [vmem:[#allocation5 + $0x58] sm:$0xff]
    %v240 = vld [vmem:[#allocation5 + $0x60] sm:$0xff]
    %v241 = vld [vmem:[#allocation5 + $0x68] sm:$0xff]
    %v242 = vld [vmem:[#allocation5 + $0x70] sm:$0xff]
    %v243 = vld [vmem:[#allocation5 + $0x78] sm:$0xff]
    %v244 = vld [vmem:[#allocation8] sm:$0xff]
    %v245 = vld [vmem:[#allocation8 + $0x8] sm:$0xff]
    %v246 = vld [vmem:[#allocation8 + $0x10] sm:$0xff]
    %v247 = vld [vmem:[#allocation8 + $0x18] sm:$0xff]
    %v248 = vld [vmem:[#allocation8 + $0x20] sm:$0xff]
    %v249 = vld [vmem:[#allocation8 + $0x28] sm:$0xff]
    %v250 = vld [vmem:[#allocation8 + $0x30] sm:$0xff]
    %v251 = vld [vmem:[#allocation8 + $0x38] sm:$0xff]
    %v252 = vld [vmem:[#allocation8 + $0x40] sm:$0xff]
    %v253 = vld [vmem:[#allocation8 + $0x48] sm:$0xff]
    %v254 = vld [vmem:[#allocation8 + $0x50] sm:$0xff]
    %v255 = vld [vmem:[#allocation8 + $0x58] sm:$0xff]
    %v256 = vld [vmem:[#allocation8 + $0x60] sm:$0xff]
    %v257 = vld [vmem:[#allocation8 + $0x68] sm:$0xff]
    %v258 = vld [vmem:[#allocation8 + $0x70] sm:$0xff]
    %v259 = vld [vmem:[#allocation8 + $0x78] sm:$0xff]
    %v260 = vld [vmem:[%s5] sm:$0x1]
    %v262 = vperm.slane %v260, 0
    %264 = vmatpush.xpose.msra.mxu0 %v259
    %265 = vmatpush.xpose.msra.mxu0 %v258
    %266 = vmatpush.xpose.msra.mxu0 %v257
    %267 = vmatpush.xpose.msra.mxu0 %v256
    %268 = vmatpush.xpose.msra.mxu0 %v255
    %269 = vmatpush.xpose.msra.mxu0 %v254
    %270 = vmatpush.xpose.msra.mxu0 %v253
    %271 = vmatpush.xpose.msra.mxu0 %v252
    %272 = vmatpush.xpose.msra.mxu0 %v251
    %273 = vmatpush.xpose.msra.mxu0 %v250
    %274 = vmatpush.xpose.msra.mxu0 %v249
    %275 = vmatpush.xpose.msra.mxu0 %v248
    %276 = vmatpush.xpose.msra.mxu0 %v247
    %277 = vmatpush.xpose.msra.mxu0 %v246
    %278 = vmatpush.xpose.msra.mxu0 %v245
    %279 = vmatpush.xpose.msra.mxu0 %v244
    %280 = vmatmul.f32.gmra.mxu0 %v228
    %v281 = vpop.f32.mrf.mxu0
    %v282 = vadd.f32 %v262, %v281
    %283 = vmatmul.f32.gmra.mxu0 %v229
    %v284 = vpop.f32.mrf.mxu0
    %v285 = vadd.f32 %v262, %v284
    %286 = vmatmul.f32.gmra.mxu0 %v230
    %v287 = vpop.f32.mrf.mxu0
    %v288 = vadd.f32 %v262, %v287
    %289 = vmatmul.f32.gmra.mxu0 %v231
    %v290 = vpop.f32.mrf.mxu0
    %v291 = vadd.f32 %v262, %v290
    %292 = vmatmul.f32.gmra.mxu0 %v232
    %v293 = vpop.f32.mrf.mxu0
    %v294 = vadd.f32 %v262, %v293
    %295 = vmatmul.f32.gmra.mxu0 %v233
    %v296 = vpop.f32.mrf.mxu0
    %v297 = vadd.f32 %v262, %v296
    %298 = vmatmul.f32.gmra.mxu0 %v234
    %v299 = vpop.f32.mrf.mxu0
    %v300 = vadd.f32 %v262, %v299
    %301 = vmatmul.f32.gmra.mxu0 %v235
    %v302 = vpop.f32.mrf.mxu0
    %v303 = vadd.f32 %v262, %v302
    %304 = vmatmul.f32.gmra.mxu0 %v236
    %v305 = vpop.f32.mrf.mxu0
    %v306 = vadd.f32 %v262, %v305
    %307 = vmatmul.f32.gmra.mxu0 %v237
    %v308 = vpop.f32.mrf.mxu0
    %v309 = vadd.f32 %v262, %v308
    %310 = vmatmul.f32.gmra.mxu0 %v238
    %v311 = vpop.f32.mrf.mxu0
    %v312 = vadd.f32 %v262, %v311
    %313 = vmatmul.f32.gmra.mxu0 %v239
    %v314 = vpop.f32.mrf.mxu0
    %v315 = vadd.f32 %v262, %v314
    %316 = vmatmul.f32.gmra.mxu0 %v240
    %v317 = vpop.f32.mrf.mxu0
    %v318 = vadd.f32 %v262, %v317
    %319 = vmatmul.f32.gmra.mxu0 %v241
    %v320 = vpop.f32.mrf.mxu0
    %v321 = vadd.f32 %v262, %v320
    %322 = vmatmul.f32.gmra.mxu0 %v242
    %v323 = vpop.f32.mrf.mxu0
    %v324 = vadd.f32 %v262, %v323
    %325 = vmatmul.f32.gmra.mxu0 %v243
    %v326 = vpop.f32.mrf.mxu0
    %v327 = vadd.f32 %v262, %v326
    %328 = vdwg.mxu0
    %v329 = vmul.f32 %v282, 3.0
    %v330 = vmul.f32 %v285, 3.0
    %v331 = vmul.f32 %v288, 3.0
    %v332 = vmul.f32 %v291, 3.0
    %v333 = vmul.f32 %v294, 3.0
    %v334 = vmul.f32 %v297, 3.0
    %v335 = vmul.f32 %v300, 3.0
    %v336 = vmul.f32 %v303, 3.0
    %v337 = vmul.f32 %v306, 3.0
    %v338 = vmul.f32 %v309, 3.0
    %v339 = vmul.f32 %v312, 3.0
    %v340 = vmul.f32 %v315, 3.0
    %v341 = vmul.f32 %v318, 3.0
    %v342 = vmul.f32 %v321, 3.0
    %v343 = vmul.f32 %v324, 3.0
    %v344 = vmul.f32 %v327, 3.0
    %v345 = vtanh.pop %v329
    %v346 = vtanh.pop %v330
    %v347 = vtanh.pop %v331
    %v348 = vtanh.pop %v332
    %v349 = vtanh.pop %v333
    %v350 = vtanh.pop %v334
    %v351 = vtanh.pop %v335
    %v352 = vtanh.pop %v336
    %v353 = vtanh.pop %v337
    %v354 = vtanh.pop %v338
    %v355 = vtanh.pop %v339
    %v356 = vtanh.pop %v340
    %v357 = vtanh.pop %v341
    %v358 = vtanh.pop %v342
    %v359 = vtanh.pop %v343
    %v360 = vtanh.pop %v344
    %v361 = vpack.c.bf16 %v346, %v345
    %v362 = vpack.c.bf16 %v348, %v347
    %v363 = vpack.c.bf16 %v350, %v349
    %v364 = vpack.c.bf16 %v352, %v351
    %v365 = vpack.c.bf16 %v354, %v353
    %v366 = vpack.c.bf16 %v356, %v355
    %v367 = vpack.c.bf16 %v358, %v357
    %v368 = vpack.c.bf16 %v360, %v359
    %369 = vmatpush.bf16.xpose.msra.mxu0 %v368
    %370 = vmatpush.bf16.xpose.msra.mxu0 %v367
    %371 = vmatpush.bf16.xpose.msra.mxu0 %v366
    %372 = vmatpush.bf16.xpose.msra.mxu0 %v365
    %373 = vmatpush.bf16.xpose.msra.mxu0 %v364
    %374 = vmatpush.bf16.xpose.msra.mxu0 %v363
    %375 = vmatpush.bf16.xpose.msra.mxu0 %v362
    %376 = vmatpush.bf16.xpose.msra.mxu0 %v361
    %377 = vmatmul.bf16.gmra.mxu0 %v220
    %v378 = vpop.f32.mrf.mxu0
    %v379 = vadd.f32 0.0, %v378
    %v380 = vpop.f32.mrf.mxu0
    %v381 = vadd.f32 0.0, %v380
    %382 = vmatmul.bf16.gmra.mxu0 %v221
    %v383 = vpop.f32.mrf.mxu0
    %v384 = vadd.f32 0.0, %v383
    %v385 = vpop.f32.mrf.mxu0
    %v386 = vadd.f32 0.0, %v385
    %387 = vmatmul.bf16.gmra.mxu0 %v222
    %v388 = vpop.f32.mrf.mxu0
    %v389 = vadd.f32 0.0, %v388
    %v390 = vpop.f32.mrf.mxu0
    %v391 = vadd.f32 0.0, %v390
    %392 = vmatmul.bf16.gmra.mxu0 %v223
    %v393 = vpop.f32.mrf.mxu0
    %v394 = vadd.f32 0.0, %v393
    %v395 = vpop.f32.mrf.mxu0
    %v396 = vadd.f32 0.0, %v395
    %397 = vmatmul.bf16.gmra.mxu0 %v224
    %v398 = vpop.f32.mrf.mxu0
    %v399 = vadd.f32 0.0, %v398
    %v400 = vpop.f32.mrf.mxu0
    %v401 = vadd.f32 0.0, %v400
    %402 = vmatmul.bf16.gmra.mxu0 %v225
    %v403 = vpop.f32.mrf.mxu0
    %v404 = vadd.f32 0.0, %v403
    %v405 = vpop.f32.mrf.mxu0
    %v406 = vadd.f32 0.0, %v405
    %407 = vmatmul.bf16.gmra.mxu0 %v226
    %v408 = vpop.f32.mrf.mxu0
    %v409 = vadd.f32 0.0, %v408
    %v410 = vpop.f32.mrf.mxu0
    %v411 = vadd.f32 0.0, %v410
    %412 = vmatmul.bf16.gmra.mxu0 %v227
    %v413 = vpop.f32.mrf.mxu0
    %v414 = vadd.f32 0.0, %v413
    %v415 = vpop.f32.mrf.mxu0
    %v416 = vadd.f32 0.0, %v415
    %417 = vdwg.mxu0
    %418 = vmatpush.bf16.xpose.msra.mxu0 %v227
    %419 = vmatpush.bf16.xpose.msra.mxu0 %v226
    %420 = vmatpush.bf16.xpose.msra.mxu0 %v225
    %421 = vmatpush.bf16.xpose.msra.mxu0 %v224
    %422 = vmatpush.bf16.xpose.msra.mxu0 %v223
    %423 = vmatpush.bf16.xpose.msra.mxu0 %v222
    %424 = vmatpush.bf16.xpose.msra.mxu0 %v221
    %425 = vmatpush.bf16.xpose.msra.mxu0 %v220
    %426 = vmatmul.bf16.gmra.mxu0 %v361
    %v427 = vpop.f32.mrf.mxu0
    %v428 = vadd.f32 0.0, %v427
    %v429 = vpop.f32.mrf.mxu0
    %v430 = vadd.f32 0.0, %v429
    %431 = vmatmul.bf16.gmra.mxu0 %v362
    %v432 = vpop.f32.mrf.mxu0
    %v433 = vadd.f32 0.0, %v432
    %v434 = vpop.f32.mrf.mxu0
    %v435 = vadd.f32 0.0, %v434
    %436 = vmatmul.bf16.gmra.mxu0 %v363
    %v437 = vpop.f32.mrf.mxu0
    %v438 = vadd.f32 0.0, %v437
    %v439 = vpop.f32.mrf.mxu0
    %v440 = vadd.f32 0.0, %v439
    %441 = vmatmul.bf16.gmra.mxu0 %v364
    %v442 = vpop.f32.mrf.mxu0
    %v443 = vadd.f32 0.0, %v442
    %v444 = vpop.f32.mrf.mxu0
    %v445 = vadd.f32 0.0, %v444
    %446 = vmatmul.bf16.gmra.mxu0 %v365
    %v447 = vpop.f32.mrf.mxu0
    %v448 = vadd.f32 0.0, %v447
    %v449 = vpop.f32.mrf.mxu0
    %v450 = vadd.f32 0.0, %v449
    %451 = vmatmul.bf16.gmra.mxu0 %v366
    %v452 = vpop.f32.mrf.mxu0
    %v453 = vadd.f32 0.0, %v452
    %v454 = vpop.f32.mrf.mxu0
    %v455 = vadd.f32 0.0, %v454
    %456 = vmatmul.bf16.gmra.mxu0 %v367
    %v457 = vpop.f32.mrf.mxu0
    %v458 = vadd.f32 0.0, %v457
    %v459 = vpop.f32.mrf.mxu0
    %v460 = vadd.f32 0.0, %v459
    %461 = vmatmul.bf16.gmra.mxu0 %v368
    %v462 = vpop.f32.mrf.mxu0
    %v463 = vadd.f32 0.0, %v462
    %v464 = vpop.f32.mrf.mxu0
    %v465 = vadd.f32 0.0, %v464
    %466 = vdwg.mxu0
    %v467 = vsub.f32 %v379, %v428
    %v468 = vsub.f32 %v381, %v430
    %v469 = vsub.f32 %v384, %v433
    %v470 = vsub.f32 %v386, %v435
    %v471 = vsub.f32 %v389, %v438
    %v472 = vsub.f32 %v391, %v440
    %v473 = vsub.f32 %v394, %v443
    %v474 = vsub.f32 %v396, %v445
    %v475 = vsub.f32 %v399, %v448
    %v476 = vsub.f32 %v401, %v450
    %v477 = vsub.f32 %v404, %v453
    %v478 = vsub.f32 %v406, %v455
    %v479 = vsub.f32 %v409, %v458
    %v480 = vsub.f32 %v411, %v460
    %v481 = vsub.f32 %v414, %v463
    %v482 = vsub.f32 %v416, %v465
    %v483 = vmul.f32 %v467, 3.0
    %v484 = vmul.f32 %v468, 3.0
    %v485 = vmul.f32 %v469, 3.0
    %v486 = vmul.f32 %v470, 3.0
    %v487 = vmul.f32 %v471, 3.0
    %v488 = vmul.f32 %v472, 3.0
    %v489 = vmul.f32 %v473, 3.0
    %v490 = vmul.f32 %v474, 3.0
    %v491 = vmul.f32 %v475, 3.0
    %v492 = vmul.f32 %v476, 3.0
    %v493 = vmul.f32 %v477, 3.0
    %v494 = vmul.f32 %v478, 3.0
    %v495 = vmul.f32 %v479, 3.0
    %v496 = vmul.f32 %v480, 3.0
    %v497 = vmul.f32 %v481, 3.0
    %v498 = vmul.f32 %v482, 3.0
    %v499 = vtanh.pop %v483
    %v500 = vtanh.pop %v484
    %v501 = vtanh.pop %v485
    %v502 = vtanh.pop %v486
    %v503 = vtanh.pop %v487
    %v504 = vtanh.pop %v488
    %v505 = vtanh.pop %v489
    %v506 = vtanh.pop %v490
    %v507 = vtanh.pop %v491
    %v508 = vtanh.pop %v492
    %v509 = vtanh.pop %v493
    %v510 = vtanh.pop %v494
    %v511 = vtanh.pop %v495
    %v512 = vtanh.pop %v496
    %v513 = vtanh.pop %v497
    %v514 = vtanh.pop %v498
    %v515 = vmax.f32 %v499, 0.0
    %v516 = vmax.f32 %v500, 0.0
    %v517 = vmax.f32 %v501, 0.0
    %v518 = vmax.f32 %v502, 0.0
    %v519 = vmax.f32 %v503, 0.0
    %v520 = vmax.f32 %v504, 0.0
    %v521 = vmax.f32 %v505, 0.0
    %v522 = vmax.f32 %v506, 0.0
    %v523 = vmax.f32 %v507, 0.0
    %v524 = vmax.f32 %v508, 0.0
    %v525 = vmax.f32 %v509, 0.0
    %v526 = vmax.f32 %v510, 0.0
    %v527 = vmax.f32 %v511, 0.0
    %v528 = vmax.f32 %v512, 0.0
    %v529 = vmax.f32 %v513, 0.0
    %v530 = vmax.f32 %v514, 0.0
    %531 = vst [vmem:[#allocation10] sm:$0xff] %v515
    %532 = vst [vmem:[#allocation10 + $0x8] sm:$0xff] %v516
    %533 = vst [vmem:[#allocation10 + $0x10] sm:$0xff] %v517
    %534 = vst [vmem:[#allocation10 + $0x18] sm:$0xff] %v518
    %535 = vst [vmem:[#allocation10 + $0x20] sm:$0xff] %v519
    %536 = vst [vmem:[#allocation10 + $0x28] sm:$0xff] %v520
    %537 = vst [vmem:[#allocation10 + $0x30] sm:$0xff] %v521
    %538 = vst [vmem:[#allocation10 + $0x38] sm:$0xff] %v522
    %539 = vst [vmem:[#allocation10 + $0x40] sm:$0xff] %v523
    %540 = vst [vmem:[#allocation10 + $0x48] sm:$0xff] %v524
    %541 = vst [vmem:[#allocation10 + $0x50] sm:$0xff] %v525
    %542 = vst [vmem:[#allocation10 + $0x58] sm:$0xff] %v526
    %543 = vst [vmem:[#allocation10 + $0x60] sm:$0xff] %v527
    %544 = vst [vmem:[#allocation10 + $0x68] sm:$0xff] %v528
    %545 = vst [vmem:[#allocation10 + $0x70] sm:$0xff] %v529
    %546 = vst [vmem:[#allocation10 + $0x78] sm:$0xff] %v530
    // Predicated region
    $region42: #{tpu_custom_call.1} parent=1 // pred_check
      _
    $region43: #{tpu_custom_call.1} parent=1 // pred_check_branch
      %548 = sbr.rel (0) target = $region45
    $region44: #{tpu_custom_call.1} parent=1 // pred_region
      %550 = vsyncadd [#allocation4], 0
      %s551 = sshll.u32 [#allocation10], 4
      %s552 = int_to_ptr.vmem [resolvable:$true] %s551
      %s553 = sshll.u32 %s6, 4
      %s554 = int_to_ptr.hbm [resolvable:$true] %s553
      %559 = dma.vmem_to_hbm [thread:$0]  %s552, 2048, %s554, [#allocation4], 128, 128, 8
    $region45: #{tpu_custom_call.1} parent=1 // pred_fallthru
      _
    // Predicated region
    $region46: #{tpu_custom_call.1} parent=1 // pred_check
      _
    $region47: #{tpu_custom_call.1} parent=1 // pred_check_branch
      %561 = sbr.rel (0) target = $region49
    $region48: #{tpu_custom_call.1} parent=1 // pred_region
      %563 = dma.done [#allocation4], 2048
    $region49: #{tpu_custom_call.1} parent=1 // pred_fallthru
      _
    %564 = vsyncpa [#allocation3], 1
    %565 = vsyncpa [#allocation6], 1
    %566 = vsyncpa [#allocation9], 1
    %567 = vsyncpa [#allocation4], 1

</llo_original>
